<compile_context>
chip_gen: v7x
topology: tpu7x:2x2x1
jax: 0.10.0
libtpu: 0.0.40
codegen_flags: <defaults>
</compile_context>

<pallas_src>
import jax
import jax.numpy as jnp
import numpy as np
from jax.experimental import pallas as pl
from jax.experimental.pallas import tpu as pltpu


def fused_convt_kernel(p_ref, out_ref):
    # Single packed (8,128) tile.  Row layout (lanes 0..71 live, rest zero):
    #   0: X0 = x[c]    tiled over the 6 output rows
    #   1: X1 = x[c-1]  tiled over the 6 output rows
    #   2: X2 = x[c-2]  tiled over the 6 output rows
    #   3: A_r  per-output-row coefficient, broadcast over its 12 lanes
    #   4: B_r
    #   5: C_r
    #   6: K_r[c]  folded conv biases + edge masks
    #   7: zero padding
    x0 = p_ref[0:1, :]
    x1 = p_ref[1:2, :]
    x2 = p_ref[2:3, :]
    a = p_ref[3:4, :]
    b = p_ref[4:5, :]
    c = p_ref[5:6, :]
    k = p_ref[6:7, :]
    out_ref[...] = a * x0 + b * x1 + c * x2 + k


def _collapse_params(w1, b1, w2, b2):
    """Fold ConvT1d->ConvT2d weights into per-output-row affine coefficients.

    Returns A, B, C of shape (2, 3) (coefficients of x[c], x[c-1], x[c-2])
    and K of shape (2, 3, 12) (bias/edge-mask constant per output element).
    """
    f32 = jnp.float32
    w1c = w1.reshape(2, 2).astype(f32)      # [h, k]    (ConvT1d weight, in_ch=1)
    b1c = b1.reshape(2).astype(f32)         # [h]
    w2c = w2.reshape(2, 2, 2).astype(f32)   # [co, kh, kw] (ConvT2d weight, in_ch=1)
    b2c = b2.reshape(2).astype(f32)         # [co]

    z = jnp.zeros((2,), f32)
    # alpha[co, i, h]: weight multiplying v1[h, c]   in output row (co, i)
    # beta [co, i, h]: weight multiplying v1[h, c-1] in output row (co, i)
    alpha = jnp.stack([jnp.stack([w2c[:, 0, 0], z], -1),
                       jnp.stack([w2c[:, 1, 0], w2c[:, 0, 0]], -1),
                       jnp.stack([z, w2c[:, 1, 0]], -1)], axis=1)      # (2,3,2)
    beta = jnp.stack([jnp.stack([w2c[:, 0, 1], z], -1),
                      jnp.stack([w2c[:, 1, 1], w2c[:, 0, 1]], -1),
                      jnp.stack([z, w2c[:, 1, 1]], -1)], axis=1)       # (2,3,2)

    # v1[h,c]   = w1[h,0]*x[c]   + w1[h,1]*x[c-1] + b1[h]*mask0[c]
    # v1[h,c-1] = w1[h,0]*x[c-1] + w1[h,1]*x[c-2] + b1[h]*mask1[c]
    A = jnp.einsum('cih,h->ci', alpha, w1c[:, 0])
    B = jnp.einsum('cih,h->ci', alpha, w1c[:, 1]) + jnp.einsum('cih,h->ci', beta, w1c[:, 0])
    C = jnp.einsum('cih,h->ci', beta, w1c[:, 1])
    D = jnp.einsum('cih,h->ci', alpha, b1c)        # multiplies mask0
    E = jnp.einsum('cih,h->ci', beta, b1c)         # multiplies mask1

    cidx = jnp.arange(12)
    mask0 = (cidx <= 10).astype(f32)               # v1[:, c]   valid
    mask1 = (cidx >= 1).astype(f32)                # v1[:, c-1] valid
    K = D[..., None] * mask0 + E[..., None] * mask1 + b2c[:, None, None]  # (2,3,12)
    return A, B, C, K


@jax.jit
def model_forward(x, w1, b1, w2, b2):
    """x: (1,1,10); w1: (1,2,2); b1: (2,); w2: (1,2,2,2); b2: (2,) -> (2,3,12)."""
    f32 = jnp.float32
    A, B, C, K = _collapse_params(w1, b1, w2, b2)

    xf = x.reshape(10).astype(f32)
    X0 = jnp.zeros((12,), f32).at[0:10].set(xf)    # x[c]
    X1 = jnp.zeros((12,), f32).at[1:11].set(xf)    # x[c-1]
    X2 = jnp.zeros((12,), f32).at[2:12].set(xf)    # x[c-2]

    lane0 = jnp.zeros((128,), f32)

    def lanes72(v):
        return lane0.at[:72].set(v)

    packed = jnp.stack([
        lanes72(jnp.tile(X0, 6)),                  # row 0
        lanes72(jnp.tile(X1, 6)),                  # row 1
        lanes72(jnp.tile(X2, 6)),                  # row 2
        lanes72(jnp.repeat(A.reshape(6), 12)),     # row 3
        lanes72(jnp.repeat(B.reshape(6), 12)),     # row 4
        lanes72(jnp.repeat(C.reshape(6), 12)),     # row 5
        lanes72(K.reshape(72)),                    # row 6
        lane0,                                     # row 7 (padding)
    ], axis=0)                                     # (8,128): exactly one f32 vreg tile

    out_row = pl.pallas_call(
        fused_convt_kernel,
        out_shape=jax.ShapeDtypeStruct((1, 128), jnp.float32),
        in_specs=[pl.BlockSpec(memory_space=pltpu.MemorySpace.VMEM)],
        out_specs=pl.BlockSpec(memory_space=pltpu.MemorySpace.VMEM),
        cost_estimate=pl.CostEstimate(flops=7 * 128, transcendentals=0,
                                      bytes_accessed=(8 * 128 + 128) * 4),
    )(packed)

    return out_row[0, :72].reshape(2, 3, 12)


def ref_forward(x, w1, b1, w2, b2):
    """Pure numpy reference matching PyTorch ConvTranspose semantics."""
    v1 = np.zeros((1, 2, 11), np.float32)
    for co in range(2):
        v1[0, co] += b1[co]
        for k in range(2):
            for i in range(10):
                v1[0, co, i + k] += x[0, 0, i] * w1[0, co, k]
    # ConvTranspose2d sees v1 (1,2,11) as unbatched (C_in=1, H=2, W=11)
    inp = v1[0].reshape(1, 2, 11)
    v2 = np.zeros((2, 3, 12), np.float32)
    for co in range(2):
        v2[co] += b2[co]
        for kh in range(2):
            for kw in range(2):
                for i in range(2):
                    for j in range(11):
                        v2[co, i + kh, j + kw] += inp[0, i, j] * w2[0, co, kh, kw]
    return v2


if __name__ == "__main__":
    key = jax.random.PRNGKey(0)
    kx, kw1, kb1, kw2, kb2 = jax.random.split(key, 5)
    # Shapes follow the module: x1 = randn(1,1,10), ConvT1d(1,2,2), ConvT2d(1,2,2)
    x = jax.random.normal(kx, (1, 1, 10), jnp.float32)
    w1 = jax.random.normal(kw1, (1, 2, 2), jnp.float32) * 0.5
    b1 = jax.random.normal(kb1, (2,), jnp.float32) * 0.1
    w2 = jax.random.normal(kw2, (1, 2, 2, 2), jnp.float32) * 0.5
    b2 = jax.random.normal(kb2, (2,), jnp.float32) * 0.1

    out = jax.block_until_ready(model_forward(x, w1, b1, w2, b2))

    ref = ref_forward(np.asarray(x), np.asarray(w1), np.asarray(b1),
                      np.asarray(w2), np.asarray(b2))
    assert out.shape == (2, 3, 12), out.shape
    np.testing.assert_allclose(np.asarray(out), ref, rtol=1e-4, atol=1e-5)
    print("KERNEL_OK")
</pallas_src>

<mosaic_0001>
module attributes {stable_mosaic.version = 11 : i64} {
  func.func @fused_convt_kernel(%arg0: memref<8x128xf32, #tpu.memory_space<vmem>>, %arg1: memref<1x128xf32, #tpu.memory_space<vmem>>) attributes {dimension_semantics = [], scalar_prefetch = 0 : i64, scratch_operands = 0 : i64, tpu.core_type = #tpu.core_type<tc>} {
    %c0 = arith.constant 0 : index
    %c0_0 = arith.constant 0 : index
    %0 = vector.load %arg0[%c0, %c0_0] : memref<8x128xf32, #tpu.memory_space<vmem>>, vector<1x128xf32>
    %c1 = arith.constant 1 : index
    %c0_1 = arith.constant 0 : index
    %1 = vector.load %arg0[%c1, %c0_1] : memref<8x128xf32, #tpu.memory_space<vmem>>, vector<1x128xf32>
    %c2 = arith.constant 2 : index
    %c0_2 = arith.constant 0 : index
    %2 = vector.load %arg0[%c2, %c0_2] : memref<8x128xf32, #tpu.memory_space<vmem>>, vector<1x128xf32>
    %c3 = arith.constant 3 : index
    %c0_3 = arith.constant 0 : index
    %3 = vector.load %arg0[%c3, %c0_3] : memref<8x128xf32, #tpu.memory_space<vmem>>, vector<1x128xf32>
    %c4 = arith.constant 4 : index
    %c0_4 = arith.constant 0 : index
    %4 = vector.load %arg0[%c4, %c0_4] : memref<8x128xf32, #tpu.memory_space<vmem>>, vector<1x128xf32>
    %c5 = arith.constant 5 : index
    %c0_5 = arith.constant 0 : index
    %5 = vector.load %arg0[%c5, %c0_5] : memref<8x128xf32, #tpu.memory_space<vmem>>, vector<1x128xf32>
    %c6 = arith.constant 6 : index
    %c0_6 = arith.constant 0 : index
    %6 = vector.load %arg0[%c6, %c0_6] : memref<8x128xf32, #tpu.memory_space<vmem>>, vector<1x128xf32>
    %7 = arith.mulf %3, %0 : vector<1x128xf32>
    %8 = arith.mulf %4, %1 : vector<1x128xf32>
    %9 = arith.addf %7, %8 : vector<1x128xf32>
    %10 = arith.mulf %5, %2 : vector<1x128xf32>
    %11 = arith.addf %9, %10 : vector<1x128xf32>
    %12 = arith.addf %11, %6 : vector<1x128xf32>
    %c0_7 = arith.constant 0 : index
    %c0_8 = arith.constant 0 : index
    %13 = vector.load %arg1[%c0_7, %c0_8] : memref<1x128xf32, #tpu.memory_space<vmem>>, vector<1x128xf32>
    tpu.vector_store %arg1[%c0_7, %c0_8], %12 {strides = array<i32>} : memref<1x128xf32, #tpu.memory_space<vmem>>, vector<1x128xf32>,
    return
  }
}

</mosaic_0001>

<llo_original>
// kernel: tile.18
$region0: #{tile.18}
  #allocation0 [shape = 's32[1]{0}', space=sflag, size = 0x4, scoped, tag = 'scoped memory for tile.18']
  %s0 = inlined_call_operand.vmem [shape: f32[12], index: 0, kind: input, shape index: {}]
  %s1 = inlined_call_operand.vmem [shape: f32[6,12], index: 1, kind: output, shape index: {}]
  // Predicated region
  $region2: #{tile.18} parent=0 // pred_check
    _
  $region3: #{tile.18} parent=0 // pred_check_branch
    %3 = sbr.rel (0) target = $region5
  $region4: #{tile.18} parent=0 // pred_region
    _
  $region5: #{tile.18} parent=0 // pred_fallthru
    _
  %v4 = vld [vmem:[%s0] ss:$0 sm:$0xff]
  %5 = vst [vmem:[%s1] sm:$0xff] %v4

// kernel: squeeze.25
$region0: #{squeeze.25}
  %s0 = inlined_call_operand.vmem [shape: f32[72], index: 0, kind: input, shape index: {}]
  %s1 = inlined_call_operand.vmem [shape: f32[2,3,12], index: 1, kind: output, shape index: {}]
  $region1: #{squeeze.25} parent=0
    #allocation0 [shape = 'u8[8192]{0}', space=vmem, size = 0x2000, scoped, tag = 'scoped mem for output reshape']
    #allocation1 [shape = 'u8[4096]{0}', space=vmem, size = 0x1000, scoped, tag = 'scoped mem for input reshape']
    %s3 = sshllo.u32 0, 1
    %v4 = vld [vmem:[%s0] sm:%s3]
    %5 = vst [vmem:[#allocation1] sm:%s3] %v4
    %v6 = vld [vmem:[#allocation1] sm:$0x1]
    %vm7 = vcmask 97280
    %8 = vst.msk [vmem:[#allocation0] sm:$0x1] %vm7, %v6
    %v9 = vld [vmem:[#allocation1] sm:$0x1]
    %10 = vrot.lane.b32.xlu0 %v9, 116
    %v11 = vpop.permute.xlu0 %10
    %vm12 = vcmask 97280
    %s13 = scalar_lea.vmem [#allocation0], 1
    %14 = vst.msk [vmem:[%s13] sm:$0x1] %vm12, %v11
    %v15 = vld [vmem:[#allocation1] sm:$0x1]
    %16 = vrot.lane.b32.xlu0 %v15, 104
    %v17 = vpop.permute.xlu0 %16
    %vm18 = vcmask 97280
    %s19 = scalar_lea.vmem [#allocation0], 2
    %20 = vst.msk [vmem:[%s19] sm:$0x1] %vm18, %v17
    %v21 = vld [vmem:[#allocation1] sm:$0x1]
    %22 = vrot.lane.b32.xlu0 %v21, 92
    %v23 = vpop.permute.xlu0 %22
    %vm24 = vcmask 97280
    %s25 = scalar_lea.vmem [#allocation0], 8
    %26 = vst.msk [vmem:[%s25] sm:$0x1] %vm24, %v23
    %v27 = vld [vmem:[#allocation1] sm:$0x1]
    %28 = vrot.lane.b32.xlu0 %v27, 80
    %v29 = vpop.permute.xlu0 %28
    %vm30 = vcmask 97280
    %s31 = scalar_lea.vmem [#allocation0], 9
    %32 = vst.msk [vmem:[%s31] sm:$0x1] %vm30, %v29
    %v33 = vld [vmem:[#allocation1] sm:$0x1]
    %34 = vrot.lane.b32.xlu0 %v33, 68
    %v35 = vpop.permute.xlu0 %34
    %vm36 = vcmask 97280
    %s37 = scalar_lea.vmem [#allocation0], 10
    %38 = vst.msk [vmem:[%s37] sm:$0x1] %vm36, %v35
    %s40 = sshllo.u32 0, 4
    %v42 = vld [vmem:[#allocation0] sm:%s40]
    %s43 = sshllo.u32 0, 4
    %44 = vst [vmem:[%s1] sm:%s43] %v42
    %s45 = scalar_lea.vmem [#allocation0], 8
    %v46 = vld [vmem:[%s45] sm:%s40]
    %s47 = sshllo.u32 0, 4
    %s48 = scalar_lea.vmem %s1, 4
    %49 = vst [vmem:[%s48] sm:%s47] %v46

// kernel: model_forward.1
$region0: #{model_forward.1}
  #allocation0 [shape = 'u32[]', space=smem, size = 0x4, offset = 0x4, fixed_abs, tag = 'smem constant byte address 0x4 - core index']
  #allocation1 [shape = 'u32[144,128]{1,0:T(1,128)}', space=vmem, size = 0x12000, scoped, tag = 'internal scratch']
  %s0 = inlined_call_operand.vmem [shape: f32[8,128], index: 0, kind: input, shape index: {}]
  %s1 = inlined_call_operand.vmem [shape: f32[1,128], index: 1, kind: output, shape index: {}]
  %s2 = sld [smem:[#allocation0]]
  $region14: #{model_forward.1} parent=0
    _
  %s4 = ssub.s32 1, %s2
  %s5 = scalar_select 0, %s4, %s2
  // Predicated region
  $region2: #{model_forward.1} parent=0 // pred_check
    _
  $region3: #{model_forward.1} parent=0 // pred_check_branch
    %7 = sbr.rel (0) target = $region5
  $region4: #{model_forward.1} parent=0 // pred_region
    _
  $region5: #{model_forward.1} parent=0 // pred_fallthru
    _
  %v8 = vld [vmem:[%s0] sm:$0x1]
  %v9 = vld [vmem:[%s0 + $0x1] sm:$0x1]
  %v10 = vld [vmem:[%s0 + $0x2] sm:$0x1]
  %v11 = vld [vmem:[%s0 + $0x3] sm:$0x1]
  %v12 = vld [vmem:[%s0 + $0x4] sm:$0x1]
  %v13 = vld [vmem:[%s0 + $0x5] sm:$0x1]
  %v14 = vld [vmem:[%s0 + $0x6] sm:$0x1]
  %v15 = vmul.f32 %v11, %v8
  %v16 = vmul.f32 %v12, %v9
  %v17 = vadd.f32 %v15, %v16
  %v18 = vmul.f32 %v13, %v10
  %v19 = vadd.f32 %v17, %v18
  %v20 = vadd.f32 %v19, %v14
  %21 = vst [vmem:[%s1] sm:$0x1] %v20
  // Predicated region
  $region6: #{model_forward.1} parent=0 // pred_check
    _
  $region7: #{model_forward.1} parent=0 // pred_check_branch
    %23 = sbr.rel (0) target = $region9
  $region8: #{model_forward.1} parent=0 // pred_region
    _
  $region9: #{model_forward.1} parent=0 // pred_fallthru
    _
  // Predicated region
  $region10: #{model_forward.1} parent=0 // pred_check
    _
  $region11: #{model_forward.1} parent=0 // pred_check_branch
    %25 = sbr.rel (0) target = $region13
  $region12: #{model_forward.1} parent=0 // pred_region
    _
  $region13: #{model_forward.1} parent=0 // pred_fallthru
    _

</llo_original>
